<compile_context>
chip_gen: v6e
topology: v6e:2x2x1
jax: 0.10.0
libtpu: 0.0.40
codegen_flags: <defaults>
</compile_context>

<pallas_src>
import jax
import jax.numpy as jnp
from jax.experimental import pallas as pl
from jax.experimental.pallas import tpu as pltpu

ALPHA = 1.0


def _round_up(a, b):
    return (a + b - 1) // b * b


def coxkmeans_kernel(
    x_ref, y_ref,
    w1_ref, b1_ref, w2_ref, b2_ref,
    wf_ref, b3_ref, w4_ref, b4_ref, w5_ref, b5_ref,
    csq_ref, wl2y_ref, brisk_ref,
    out_ref,
):
    f32 = jnp.float32
    bf16 = jnp.bfloat16

    nd1 = b3_ref.shape[-1]          # n_dec_1
    K = csq_ref.shape[-1]           # n_clusters
    n_input = b5_ref.shape[-1]

    # ----- AE encoder (Linear + ReLU); bf16 matmul operands, f32 accumulate --
    x = x_ref[...]                                                  # bf16
    h1 = jnp.maximum(
        jnp.dot(x, w1_ref[...], preferred_element_type=f32) + b1_ref[...], 0.0)
    z = jnp.maximum(
        jnp.dot(h1.astype(bf16), w2_ref[...], preferred_element_type=f32)
        + b2_ref[...], 0.0)

    # ----- one fused matmul for everything that consumes z ------------------
    # wf = [w3 | cluster^T | wl1 @ wl2_main]  :  [n_enc_2, nd1 + K + 1]
    fused = jnp.dot(z.astype(bf16), wf_ref[...], preferred_element_type=f32)
    d1 = jnp.maximum(fused[:, :nd1] + b3_ref[...], 0.0)
    cross = fused[:, nd1:nd1 + K]                                   # z @ c^T
    risk_lin = fused[:, nd1 + K:nd1 + K + 1]                        # z @ (wl1@wl2m)

    # ----- decoder tail ------------------------------------------------------
    d2 = jnp.maximum(
        jnp.dot(d1.astype(bf16), w4_ref[...], preferred_element_type=f32)
        + b4_ref[...], 0.0)
    x_bar = (jnp.dot(d2.astype(bf16), w5_ref[...], preferred_element_type=f32)
             + b5_ref[...])

    # ----- soft cluster assignment (Student's t, matmul distance form) ------
    z_sq = jnp.sum(z * z, axis=1, keepdims=True)                    # [TM, 1]
    dist2 = jnp.maximum(z_sq + csq_ref[...] - 2.0 * cross, 0.0)     # clamp cancellation
    q = pl.reciprocal(1.0 + dist2 / ALPHA, approx=True)
    expo = (ALPHA + 1.0) / 2.0
    if expo != 1.0:                                                 # alpha=1 -> identity pow
        q = q ** expo
    q = q * pl.reciprocal(jnp.sum(q, axis=1, keepdims=True), approx=True)

    # ----- survival head (layer2 weight folded into the fused matmul) -------
    risk = risk_lin + y_ref[...] * wl2y_ref[...] + brisk_ref[...]

    # ----- lane-dense packed output: [x_bar | q | risk | zero pad] ----------
    pieces = [x_bar, q, risk]
    pad = out_ref.shape[-1] - (n_input + K + 1)
    if pad > 0:
        pieces.append(jnp.zeros((x_bar.shape[0], pad), f32))
    out_ref[...] = jnp.concatenate(pieces, axis=-1)


def prepare_kernel_params(params):
    """Host-side precompute: fused weights, bf16 casts, |c|^2, folded head."""
    bf16, f32 = jnp.bfloat16, jnp.float32
    cluster = params["cluster"]                                  # [K, n_enc_2]
    w_risk = params["wl1"] @ params["wl2_main"]                  # [n_enc_2, 1]
    b_risk = params["bl1"] @ params["wl2_main"] + params["bl2"]  # [1, 1]
    w_fused = jnp.concatenate([params["w3"], cluster.T, w_risk], axis=1)
    c_sq = jnp.sum(cluster * cluster, axis=1, keepdims=True).T   # [1, K]
    return dict(
        w1=params["w1"].astype(bf16), b1=params["b1"].astype(f32),
        w2=params["w2"].astype(bf16), b2=params["b2"].astype(f32),
        w_fused=w_fused.astype(bf16), b3=params["b3"].astype(f32),
        w4=params["w4"].astype(bf16), b4=params["b4"].astype(f32),
        w5=params["w5"].astype(bf16), b5=params["b5"].astype(f32),
        c_sq=c_sq.astype(f32),
        wl2_y=params["wl2_y"].astype(f32),
        b_risk=b_risk.astype(f32),
    )


def coxkmeans_forward(x, y_pred, kp, *, tile_m=512):
    N, n_input = x.shape
    K = kp["c_sq"].shape[-1]
    n_enc_1 = kp["w1"].shape[1]
    n_enc_2 = kp["w2"].shape[1]
    n_fused = kp["w_fused"].shape[1]
    nd1 = kp["b3"].shape[1]
    nd2 = kp["w4"].shape[1]

    P = _round_up(n_input + K + 1, 128)            # lane-dense packed width
    TM = max(8, min(tile_m, _round_up(N, 8)))      # batch tile (sublane mult. of 8)
    N_pad = _round_up(N, TM)

    x_pad = jnp.pad(x.astype(jnp.bfloat16), ((0, N_pad - N), (0, 0)))
    y_pad = jnp.pad(y_pred.reshape(-1, 1).astype(jnp.float32),
                    ((0, N_pad - N), (0, 0)))

    weights = (kp["w1"], kp["b1"], kp["w2"], kp["b2"],
               kp["w_fused"], kp["b3"], kp["w4"], kp["b4"], kp["w5"], kp["b5"],
               kp["c_sq"], kp["wl2_y"], kp["b_risk"])

    def const_spec(a):
        return pl.BlockSpec(a.shape, lambda i: (0, 0))     # VMEM-resident weight

    in_specs = [
        pl.BlockSpec((TM, n_input), lambda i: (i, 0)),      # x tile
        pl.BlockSpec((TM, 1), lambda i: (i, 0)),            # y tile
    ] + [const_spec(w) for w in weights]
    out_spec = pl.BlockSpec((TM, P), lambda i: (i, 0))

    # VMEM budget: resident weights + double-buffered I/O tiles + intermediates.
    weight_bytes = sum(int(w.size) * w.dtype.itemsize for w in weights)
    io_bytes = 2 * (TM * n_input * 2 + TM * 4 + TM * P * 4)
    interm_bytes = 2 * TM * (n_enc_1 + n_enc_2 + n_fused + nd2 + P) * 4
    needed = weight_bytes + io_bytes + interm_bytes
    vmem_limit = int(min(max(2 * needed, 32 * 1024 * 1024), 56 * 1024 * 1024))

    flops = 2 * N_pad * (n_input * n_enc_1 + n_enc_1 * n_enc_2
                         + n_enc_2 * n_fused + nd1 * nd2 + nd2 * n_input)
    bytes_accessed = (int(x_pad.size) * 2 + int(y_pad.size) * 4
                      + weight_bytes + N_pad * P * 4)
    cost = pl.CostEstimate(flops=int(flops),
                           transcendentals=int(N_pad * (K + 1)),
                           bytes_accessed=int(bytes_accessed))

    packed = pl.pallas_call(
        coxkmeans_kernel,
        out_shape=jax.ShapeDtypeStruct((N_pad, P), jnp.float32),
        grid=(N_pad // TM,),
        in_specs=in_specs,
        out_specs=out_spec,
        compiler_params=pltpu.CompilerParams(
            dimension_semantics=("parallel",),
            vmem_limit_bytes=vmem_limit),
        cost_estimate=cost,
    )(x_pad, y_pad, *weights)

    x_bar = packed[:N, :n_input]
    q = packed[:N, n_input:n_input + K]
    risk = packed[:N, n_input + K:n_input + K + 1]
    return x_bar, q, risk


def init_params(key, n_input, hidden_layers, n_clusters):
    n_enc_1, n_enc_2, h3 = hidden_layers
    n_dec_1, n_dec_2 = n_enc_2, n_enc_1
    keys = jax.random.split(key, 16)

    def lin(kw, kb, fan_in, fan_out):
        # weights stored transposed: [in, out]
        w = jax.random.normal(kw, (fan_in, fan_out), jnp.float32) * 0.1
        b = jax.random.normal(kb, (1, fan_out), jnp.float32) * 0.05
        return w, b

    w1, b1 = lin(keys[0], keys[1], n_input, n_enc_1)
    w2, b2 = lin(keys[2], keys[3], n_enc_1, n_enc_2)
    w3, b3 = lin(keys[4], keys[5], n_enc_2, n_dec_1)
    w4, b4 = lin(keys[6], keys[7], n_dec_1, n_dec_2)
    w5, b5 = lin(keys[8], keys[9], n_dec_2, n_input)
    wl1, bl1 = lin(keys[10], keys[11], n_enc_2, h3)
    # layer2: Linear(h3 + 1, 1); split into the [h3,1] part and the y column.
    wl2, bl2 = lin(keys[12], keys[13], h3 + 1, 1)
    wl2_main, wl2_y = wl2[:h3, :], wl2[h3:, :]
    # cluster_layer [n_clusters, n_enc_2], xavier-normal-ish.
    cluster = jax.random.normal(keys[14], (n_clusters, n_enc_2), jnp.float32) \
        * jnp.sqrt(2.0 / (n_clusters + n_enc_2))

    return dict(
        w1=w1, b1=b1, w2=w2, b2=b2, w3=w3, b3=b3, w4=w4, b4=b4, w5=w5, b5=b5,
        cluster=cluster,
        wl1=wl1, bl1=bl1, wl2_main=wl2_main, wl2_y=wl2_y, bl2=bl2,
    )


def reference_forward(x, y_pred, params):
    """Pure f32 JAX reference of the PyTorch CoxKmeans.forward."""
    relu = lambda v: jnp.maximum(v, 0.0)
    h1 = relu(x @ params["w1"] + params["b1"])
    z = relu(h1 @ params["w2"] + params["b2"])
    d1 = relu(z @ params["w3"] + params["b3"])
    d2 = relu(d1 @ params["w4"] + params["b4"])
    x_bar = d2 @ params["w5"] + params["b5"]
    diff = z[:, None, :] - params["cluster"][None, :, :]
    q = 1.0 / (1.0 + jnp.sum(diff * diff, axis=2) / ALPHA)
    q = q ** ((ALPHA + 1.0) / 2.0)
    q = q / jnp.sum(q, axis=1, keepdims=True)
    y = y_pred.reshape(-1, 1)
    emb = z @ params["wl1"] + params["bl1"]
    risk = emb @ params["wl2_main"] + y * params["wl2_y"] + params["bl2"]
    return x_bar, q, risk


if __name__ == "__main__":
    # small config: hidden_layers=[32, 16, 8], n_clusters=4, input_nodes=32
    N, n_input = 12, 32
    hidden_layers = [32, 16, 8]
    n_clusters = 4

    key = jax.random.PRNGKey(0)
    kparam, kx, ky = jax.random.split(key, 3)
    params = init_params(kparam, n_input, hidden_layers, n_clusters)
    x = jax.random.normal(kx, (N, n_input), jnp.float32)
    y_pred = jax.random.normal(ky, (N,), jnp.float32)

    kernel_params = prepare_kernel_params(params)
    # tile_m=8 here just to exercise the multi-step grid + padding path at
    # smoke-test size; production default is 512.
    x_bar, q, risk = jax.block_until_ready(
        coxkmeans_forward(x, y_pred, kernel_params, tile_m=8))

    xb_r, q_r, r_r = reference_forward(x, y_pred, params)
    assert x_bar.shape == (N, n_input) and q.shape == (N, n_clusters) \
        and risk.shape == (N, 1)
    # bf16 matmul operands + approx reciprocal -> compare with loose tolerance
    assert jnp.allclose(x_bar, xb_r, atol=2e-2, rtol=2e-2), "x_bar mismatch"
    assert jnp.allclose(q, q_r, atol=2e-2, rtol=2e-2), "q mismatch"
    assert jnp.allclose(risk, r_r, atol=2e-2, rtol=2e-2), "risk mismatch"
    assert jnp.allclose(jnp.sum(q, axis=1), 1.0, atol=1e-2), "q rows not normalized"

    print("KERNEL_OK")
</pallas_src>

<mosaic_0001>
module attributes {stable_mosaic.version = 11 : i64} {
  func.func @coxkmeans_kernel(%arg0: i32, %arg1: memref<8x32xbf16, #tpu.memory_space<vmem>>, %arg2: memref<8x1xf32, #tpu.memory_space<vmem>>, %arg3: memref<32x32xbf16, #tpu.memory_space<vmem>>, %arg4: memref<1x32xf32, #tpu.memory_space<vmem>>, %arg5: memref<32x16xbf16, #tpu.memory_space<vmem>>, %arg6: memref<1x16xf32, #tpu.memory_space<vmem>>, %arg7: memref<16x21xbf16, #tpu.memory_space<vmem>>, %arg8: memref<1x16xf32, #tpu.memory_space<vmem>>, %arg9: memref<16x32xbf16, #tpu.memory_space<vmem>>, %arg10: memref<1x32xf32, #tpu.memory_space<vmem>>, %arg11: memref<32x32xbf16, #tpu.memory_space<vmem>>, %arg12: memref<1x32xf32, #tpu.memory_space<vmem>>, %arg13: memref<1x4xf32, #tpu.memory_space<vmem>>, %arg14: memref<1x1xf32, #tpu.memory_space<vmem>>, %arg15: memref<1x1xf32, #tpu.memory_space<vmem>>, %arg16: memref<8x128xf32, #tpu.memory_space<vmem>>) attributes {dimension_semantics = [#tpu.dimension_semantics<parallel>], iteration_bounds = array<i64: 2>, scalar_prefetch = 0 : i64, scratch_operands = 0 : i64, tpu.core_type = #tpu.core_type<tc>, window_params = [{transform_indices = @transform_0, window_bounds = array<i64: 8, 32>}, {transform_indices = @transform_1, window_bounds = array<i64: 8, 1>}, {pipeline_mode = #tpu.pipeline_mode<synchronous>, transform_indices = @transform_2, window_bounds = array<i64: 32, 32>}, {pipeline_mode = #tpu.pipeline_mode<synchronous>, transform_indices = @transform_3, window_bounds = array<i64: 1, 32>}, {pipeline_mode = #tpu.pipeline_mode<synchronous>, transform_indices = @transform_4, window_bounds = array<i64: 32, 16>}, {pipeline_mode = #tpu.pipeline_mode<synchronous>, transform_indices = @transform_5, window_bounds = array<i64: 1, 16>}, {pipeline_mode = #tpu.pipeline_mode<synchronous>, transform_indices = @transform_6, window_bounds = array<i64: 16, 21>}, {pipeline_mode = #tpu.pipeline_mode<synchronous>, transform_indices = @transform_7, window_bounds = array<i64: 1, 16>}, {pipeline_mode = #tpu.pipeline_mode<synchronous>, transform_indices = @transform_8, window_bounds = array<i64: 16, 32>}, {pipeline_mode = #tpu.pipeline_mode<synchronous>, transform_indices = @transform_9, window_bounds = array<i64: 1, 32>}, {pipeline_mode = #tpu.pipeline_mode<synchronous>, transform_indices = @transform_10, window_bounds = array<i64: 32, 32>}, {pipeline_mode = #tpu.pipeline_mode<synchronous>, transform_indices = @transform_11, window_bounds = array<i64: 1, 32>}, {pipeline_mode = #tpu.pipeline_mode<synchronous>, transform_indices = @transform_12, window_bounds = array<i64: 1, 4>}, {pipeline_mode = #tpu.pipeline_mode<synchronous>, transform_indices = @transform_13, window_bounds = array<i64: 1, 1>}, {pipeline_mode = #tpu.pipeline_mode<synchronous>, transform_indices = @transform_14, window_bounds = array<i64: 1, 1>}, {transform_indices = @transform_15, window_bounds = array<i64: 8, 128>}]} {
    %c0 = arith.constant 0 : index
    %c0_0 = arith.constant 0 : index
    %0 = vector.load %arg1[%c0, %c0_0] : memref<8x32xbf16, #tpu.memory_space<vmem>>, vector<8x32xbf16>
    %c0_1 = arith.constant 0 : index
    %c0_2 = arith.constant 0 : index
    %1 = vector.load %arg3[%c0_1, %c0_2] : memref<32x32xbf16, #tpu.memory_space<vmem>>, vector<32x32xbf16>
    %cst = arith.constant dense<0.000000e+00> : vector<8x32xf32>
    %2 = tpu.matmul %0, %1, %cst {dimension_numbers = #tpu.dot_dimension_numbers<[1], [0], [0], [1], [0, 0, 1, 1], [], []>} : vector<8x32xbf16>, vector<32x32xbf16>, vector<8x32xf32> -> vector<8x32xf32>
    %c0_3 = arith.constant 0 : index
    %c0_4 = arith.constant 0 : index
    %3 = vector.load %arg4[%c0_3, %c0_4] : memref<1x32xf32, #tpu.memory_space<vmem>>, vector<1x32xf32>
    %4 = vector.broadcast %3 : vector<1x32xf32> to vector<8x32xf32>
    %5 = arith.addf %2, %4 : vector<8x32xf32>
    %cst_5 = arith.constant 0.000000e+00 : f32
    %6 = vector.broadcast %cst_5 : f32 to vector<8x32xf32>
    %7 = arith.maximumf %5, %6 : vector<8x32xf32>
    %8 = arith.truncf %7 : vector<8x32xf32> to vector<8x32xbf16>
    %c0_6 = arith.constant 0 : index
    %c0_7 = arith.constant 0 : index
    %9 = vector.load %arg5[%c0_6, %c0_7] : memref<32x16xbf16, #tpu.memory_space<vmem>>, vector<32x16xbf16>
    %cst_8 = arith.constant dense<0.000000e+00> : vector<8x16xf32>
    %10 = tpu.matmul %8, %9, %cst_8 {dimension_numbers = #tpu.dot_dimension_numbers<[1], [0], [0], [1], [0, 0, 1, 1], [], []>} : vector<8x32xbf16>, vector<32x16xbf16>, vector<8x16xf32> -> vector<8x16xf32>
    %c0_9 = arith.constant 0 : index
    %c0_10 = arith.constant 0 : index
    %11 = vector.load %arg6[%c0_9, %c0_10] : memref<1x16xf32, #tpu.memory_space<vmem>>, vector<1x16xf32>
    %12 = vector.broadcast %11 : vector<1x16xf32> to vector<8x16xf32>
    %13 = arith.addf %10, %12 : vector<8x16xf32>
    %cst_11 = arith.constant 0.000000e+00 : f32
    %14 = vector.broadcast %cst_11 : f32 to vector<8x16xf32>
    %15 = arith.maximumf %13, %14 : vector<8x16xf32>
    %16 = arith.truncf %15 : vector<8x16xf32> to vector<8x16xbf16>
    %c0_12 = arith.constant 0 : index
    %c0_13 = arith.constant 0 : index
    %17 = vector.load %arg7[%c0_12, %c0_13] : memref<16x21xbf16, #tpu.memory_space<vmem>>, vector<16x21xbf16>
    %cst_14 = arith.constant dense<0.000000e+00> : vector<8x21xf32>
    %18 = tpu.matmul %16, %17, %cst_14 {dimension_numbers = #tpu.dot_dimension_numbers<[1], [0], [0], [1], [0, 0, 1, 1], [], []>} : vector<8x16xbf16>, vector<16x21xbf16>, vector<8x21xf32> -> vector<8x21xf32>
    %19 = vector.extract_strided_slice %18 {offsets = [0, 0], sizes = [8, 16], strides = [1, 1]} : vector<8x21xf32> to vector<8x16xf32>
    %c0_15 = arith.constant 0 : index
    %c0_16 = arith.constant 0 : index
    %20 = vector.load %arg8[%c0_15, %c0_16] : memref<1x16xf32, #tpu.memory_space<vmem>>, vector<1x16xf32>
    %21 = vector.broadcast %20 : vector<1x16xf32> to vector<8x16xf32>
    %22 = arith.addf %19, %21 : vector<8x16xf32>
    %cst_17 = arith.constant 0.000000e+00 : f32
    %23 = vector.broadcast %cst_17 : f32 to vector<8x16xf32>
    %24 = arith.maximumf %22, %23 : vector<8x16xf32>
    %25 = vector.extract_strided_slice %18 {offsets = [0, 16], sizes = [8, 4], strides = [1, 1]} : vector<8x21xf32> to vector<8x4xf32>
    %26 = vector.extract_strided_slice %18 {offsets = [0, 20], sizes = [8, 1], strides = [1, 1]} : vector<8x21xf32> to vector<8x1xf32>
    %27 = arith.truncf %24 : vector<8x16xf32> to vector<8x16xbf16>
    %c0_18 = arith.constant 0 : index
    %c0_19 = arith.constant 0 : index
    %28 = vector.load %arg9[%c0_18, %c0_19] : memref<16x32xbf16, #tpu.memory_space<vmem>>, vector<16x32xbf16>
    %cst_20 = arith.constant dense<0.000000e+00> : vector<8x32xf32>
    %29 = tpu.matmul %27, %28, %cst_20 {dimension_numbers = #tpu.dot_dimension_numbers<[1], [0], [0], [1], [0, 0, 1, 1], [], []>} : vector<8x16xbf16>, vector<16x32xbf16>, vector<8x32xf32> -> vector<8x32xf32>
    %c0_21 = arith.constant 0 : index
    %c0_22 = arith.constant 0 : index
    %30 = vector.load %arg10[%c0_21, %c0_22] : memref<1x32xf32, #tpu.memory_space<vmem>>, vector<1x32xf32>
    %31 = vector.broadcast %30 : vector<1x32xf32> to vector<8x32xf32>
    %32 = arith.addf %29, %31 : vector<8x32xf32>
    %cst_23 = arith.constant 0.000000e+00 : f32
    %33 = vector.broadcast %cst_23 : f32 to vector<8x32xf32>
    %34 = arith.maximumf %32, %33 : vector<8x32xf32>
    %35 = arith.truncf %34 : vector<8x32xf32> to vector<8x32xbf16>
    %c0_24 = arith.constant 0 : index
    %c0_25 = arith.constant 0 : index
    %36 = vector.load %arg11[%c0_24, %c0_25] : memref<32x32xbf16, #tpu.memory_space<vmem>>, vector<32x32xbf16>
    %cst_26 = arith.constant dense<0.000000e+00> : vector<8x32xf32>
    %37 = tpu.matmul %35, %36, %cst_26 {dimension_numbers = #tpu.dot_dimension_numbers<[1], [0], [0], [1], [0, 0, 1, 1], [], []>} : vector<8x32xbf16>, vector<32x32xbf16>, vector<8x32xf32> -> vector<8x32xf32>
    %c0_27 = arith.constant 0 : index
    %c0_28 = arith.constant 0 : index
    %38 = vector.load %arg12[%c0_27, %c0_28] : memref<1x32xf32, #tpu.memory_space<vmem>>, vector<1x32xf32>
    %39 = vector.broadcast %38 : vector<1x32xf32> to vector<8x32xf32>
    %40 = arith.addf %37, %39 : vector<8x32xf32>
    %41 = arith.mulf %15, %15 : vector<8x16xf32>
    %cst_29 = arith.constant dense<0.000000e+00> : vector<8xf32>
    %42 = vector.multi_reduction <add>, %41, %cst_29 [1] : vector<8x16xf32> to vector<8xf32>
    %43 = vector.shape_cast %42 : vector<8xf32> to vector<8x1xf32>
    %c0_30 = arith.constant 0 : index
    %c0_31 = arith.constant 0 : index
    %44 = vector.load %arg13[%c0_30, %c0_31] : memref<1x4xf32, #tpu.memory_space<vmem>>, vector<1x4xf32>
    %45 = vector.broadcast %43 : vector<8x1xf32> to vector<8x4xf32>
    %46 = vector.broadcast %44 : vector<1x4xf32> to vector<8x4xf32>
    %47 = arith.addf %45, %46 : vector<8x4xf32>
    %cst_32 = arith.constant 2.000000e+00 : f32
    %48 = vector.broadcast %cst_32 : f32 to vector<8x4xf32>
    %49 = arith.mulf %48, %25 : vector<8x4xf32>
    %50 = arith.subf %47, %49 : vector<8x4xf32>
    %cst_33 = arith.constant 0.000000e+00 : f32
    %51 = vector.broadcast %cst_33 : f32 to vector<8x4xf32>
    %52 = arith.maximumf %50, %51 : vector<8x4xf32>
    %cst_34 = arith.constant 1.000000e+00 : f32
    %53 = vector.broadcast %cst_34 : f32 to vector<8x4xf32>
    %54 = arith.divf %52, %53 : vector<8x4xf32>
    %cst_35 = arith.constant 1.000000e+00 : f32
    %55 = vector.broadcast %cst_35 : f32 to vector<8x4xf32>
    %56 = arith.addf %55, %54 : vector<8x4xf32>
    %57 = tpu.reciprocal %56 {approx = true} : vector<8x4xf32> -> vector<8x4xf32>
    %cst_36 = arith.constant dense<0.000000e+00> : vector<8xf32>
    %58 = vector.multi_reduction <add>, %57, %cst_36 [1] : vector<8x4xf32> to vector<8xf32>
    %59 = vector.shape_cast %58 : vector<8xf32> to vector<8x1xf32>
    %60 = tpu.reciprocal %59 {approx = true} : vector<8x1xf32> -> vector<8x1xf32>
    %61 = vector.broadcast %60 : vector<8x1xf32> to vector<8x4xf32>
    %62 = arith.mulf %57, %61 : vector<8x4xf32>
    %c0_37 = arith.constant 0 : index
    %c0_38 = arith.constant 0 : index
    %63 = vector.load %arg2[%c0_37, %c0_38] : memref<8x1xf32, #tpu.memory_space<vmem>>, vector<8x1xf32>
    %c0_39 = arith.constant 0 : index
    %c0_40 = arith.constant 0 : index
    %64 = vector.load %arg14[%c0_39, %c0_40] : memref<1x1xf32, #tpu.memory_space<vmem>>, vector<1x1xf32>
    %65 = vector.broadcast %64 : vector<1x1xf32> to vector<8x1xf32>
    %66 = arith.mulf %63, %65 : vector<8x1xf32>
    %67 = arith.addf %26, %66 : vector<8x1xf32>
    %c0_41 = arith.constant 0 : index
    %c0_42 = arith.constant 0 : index
    %68 = vector.load %arg15[%c0_41, %c0_42] : memref<1x1xf32, #tpu.memory_space<vmem>>, vector<1x1xf32>
    %69 = vector.broadcast %68 : vector<1x1xf32> to vector<8x1xf32>
    %70 = arith.addf %67, %69 : vector<8x1xf32>
    %cst_43 = arith.constant 0.000000e+00 : f32
    %71 = vector.broadcast %cst_43 : f32 to vector<8x91xf32>
    %72 = tpu.concatenate %40, %62, %70, %71 in 1 : vector<8x32xf32>, vector<8x4xf32>, vector<8x1xf32>, vector<8x91xf32> -> vector<8x128xf32>
    %c0_44 = arith.constant 0 : index
    %c0_45 = arith.constant 0 : index
    %73 = vector.load %arg16[%c0_44, %c0_45] : memref<8x128xf32, #tpu.memory_space<vmem>>, vector<8x128xf32>
    tpu.vector_store %arg16[%c0_44, %c0_45], %72 {strides = array<i32>} : memref<8x128xf32, #tpu.memory_space<vmem>>, vector<8x128xf32>,
    return
  }
  func.func @transform_0(%arg0: i32) -> (i32, i32) {
    %c0_i32 = arith.constant 0 : i32
    %c0_i32_0 = arith.constant 0 : i32
    return %arg0, %c0_i32 : i32, i32
  }
  func.func @transform_1(%arg0: i32) -> (i32, i32) {
    %c0_i32 = arith.constant 0 : i32
    %c0_i32_0 = arith.constant 0 : i32
    return %arg0, %c0_i32 : i32, i32
  }
  func.func @transform_2(%arg0: i32) -> (i32, i32) {
    %c0_i32 = arith.constant 0 : i32
    %c0_i32_0 = arith.constant 0 : i32
    %c0_i32_1 = arith.constant 0 : i32
    return %c0_i32, %c0_i32_0 : i32, i32
  }
  func.func @transform_3(%arg0: i32) -> (i32, i32) {
    %c0_i32 = arith.constant 0 : i32
    %c0_i32_0 = arith.constant 0 : i32
    %c0_i32_1 = arith.constant 0 : i32
    return %c0_i32, %c0_i32_0 : i32, i32
  }
  func.func @transform_4(%arg0: i32) -> (i32, i32) {
    %c0_i32 = arith.constant 0 : i32
    %c0_i32_0 = arith.constant 0 : i32
    %c0_i32_1 = arith.constant 0 : i32
    return %c0_i32, %c0_i32_0 : i32, i32
  }
  func.func @transform_5(%arg0: i32) -> (i32, i32) {
    %c0_i32 = arith.constant 0 : i32
    %c0_i32_0 = arith.constant 0 : i32
    %c0_i32_1 = arith.constant 0 : i32
    return %c0_i32, %c0_i32_0 : i32, i32
  }
  func.func @transform_6(%arg0: i32) -> (i32, i32) {
    %c0_i32 = arith.constant 0 : i32
    %c0_i32_0 = arith.constant 0 : i32
    %c0_i32_1 = arith.constant 0 : i32
    return %c0_i32, %c0_i32_0 : i32, i32
  }
  func.func @transform_7(%arg0: i32) -> (i32, i32) {
    %c0_i32 = arith.constant 0 : i32
    %c0_i32_0 = arith.constant 0 : i32
    %c0_i32_1 = arith.constant 0 : i32
    return %c0_i32, %c0_i32_0 : i32, i32
  }
  func.func @transform_8(%arg0: i32) -> (i32, i32) {
    %c0_i32 = arith.constant 0 : i32
    %c0_i32_0 = arith.constant 0 : i32
    %c0_i32_1 = arith.constant 0 : i32
    return %c0_i32, %c0_i32_0 : i32, i32
  }
  func.func @transform_9(%arg0: i32) -> (i32, i32) {
    %c0_i32 = arith.constant 0 : i32
    %c0_i32_0 = arith.constant 0 : i32
    %c0_i32_1 = arith.constant 0 : i32
    return %c0_i32, %c0_i32_0 : i32, i32
  }
  func.func @transform_10(%arg0: i32) -> (i32, i32) {
    %c0_i32 = arith.constant 0 : i32
    %c0_i32_0 = arith.constant 0 : i32
    %c0_i32_1 = arith.constant 0 : i32
    return %c0_i32, %c0_i32_0 : i32, i32
  }
  func.func @transform_11(%arg0: i32) -> (i32, i32) {
    %c0_i32 = arith.constant 0 : i32
    %c0_i32_0 = arith.constant 0 : i32
    %c0_i32_1 = arith.constant 0 : i32
    return %c0_i32, %c0_i32_0 : i32, i32
  }
  func.func @transform_12(%arg0: i32) -> (i32, i32) {
    %c0_i32 = arith.constant 0 : i32
    %c0_i32_0 = arith.constant 0 : i32
    %c0_i32_1 = arith.constant 0 : i32
    return %c0_i32, %c0_i32_0 : i32, i32
  }
  func.func @transform_13(%arg0: i32) -> (i32, i32) {
    %c0_i32 = arith.constant 0 : i32
    %c0_i32_0 = arith.constant 0 : i32
    %c0_i32_1 = arith.constant 0 : i32
    return %c0_i32, %c0_i32_0 : i32, i32
  }
  func.func @transform_14(%arg0: i32) -> (i32, i32) {
    %c0_i32 = arith.constant 0 : i32
    %c0_i32_0 = arith.constant 0 : i32
    %c0_i32_1 = arith.constant 0 : i32
    return %c0_i32, %c0_i32_0 : i32, i32
  }
  func.func @transform_15(%arg0: i32) -> (i32, i32) {
    %c0_i32 = arith.constant 0 : i32
    %c0_i32_0 = arith.constant 0 : i32
    return %arg0, %c0_i32 : i32, i32
  }
}

</mosaic_0001>

<llo_original>
// kernel: tpu_custom_call.1
$region0: #{tpu_custom_call.1}
  #allocation0 [shape = 'u32[]', space=smem, size = 0x4, offset = 0x4, fixed_abs, tag = 'smem constant byte address 0x4 - core index']
  #allocation1 [shape = 'u32[144,128]{1,0:T(1,128)}', space=vmem, size = 0x12000, scoped, tag = 'internal scratch']
  #allocation2 [shape = 'f32[1,1]{1,0:T(1,128)S(1)}', space=vmem, size = 0x200, scoped, tag = 'scoped memory for tpu_custom_call.1']
  #allocation3 [shape = 'f32[1,1]{1,0:T(1,128)S(1)}', space=vmem, size = 0x200, scoped, tag = 'scoped memory for tpu_custom_call.1']
  %s0 = inlined_call_operand.hbm [shape: bf16[16,32], index: 0, kind: input, shape index: {}]
  %s1 = inlined_call_operand.vmem [shape: f32[16,1], index: 1, kind: input, shape index: {}]
  %s2 = inlined_call_operand.vmem [shape: bf16[32,32], index: 2, kind: input, shape index: {}]
  %s3 = inlined_call_operand.vmem [shape: f32[1,32], index: 3, kind: input, shape index: {}]
  %s4 = inlined_call_operand.vmem [shape: bf16[32,16], index: 4, kind: input, shape index: {}]
  %s5 = inlined_call_operand.hbm [shape: f32[1,16], index: 5, kind: input, shape index: {}]
  %s6 = inlined_call_operand.vmem [shape: bf16[16,21], index: 6, kind: input, shape index: {}]
  %s7 = inlined_call_operand.hbm [shape: f32[1,16], index: 7, kind: input, shape index: {}]
  %s8 = inlined_call_operand.vmem [shape: bf16[16,32], index: 8, kind: input, shape index: {}]
  %s9 = inlined_call_operand.vmem [shape: f32[1,32], index: 9, kind: input, shape index: {}]
  %s10 = inlined_call_operand.vmem [shape: bf16[32,32], index: 10, kind: input, shape index: {}]
  %s11 = inlined_call_operand.vmem [shape: f32[1,32], index: 11, kind: input, shape index: {}]
  %s12 = inlined_call_operand.vmem [shape: f32[1,4], index: 12, kind: input, shape index: {}]
  %s13 = inlined_call_operand.<no memory space> [shape: f32[1,1], index: 13, kind: input, shape index: {}]
  %s14 = inlined_call_operand.<no memory space> [shape: f32[1,1], index: 14, kind: input, shape index: {}]
  %s15 = inlined_call_operand.hbm [shape: f32[16,128], index: 15, kind: output, shape index: {}]
  %s16 = sld [smem:[#allocation0]]
  $region105: #{tpu_custom_call.1} parent=0
    _
  %s18 = ssub.s32 1, %s16
  %s19 = scalar_select 0, %s18, %s16
  %v20 = vstv %s13
  %21 = vst [vmem:[#allocation2] sm:$0x1] %v20
  %v22 = vstv %s14
  %23 = vst [vmem:[#allocation3] sm:$0x1] %v22
  $region1: #{tpu_custom_call.1} parent=0
    #allocation4 [shape = 'u8[4096]{0}', space=vmem, size = 0x1000, scoped, tag = 'input window, operand 0']
    #allocation5 [shape = 's32[2]{0}', space=sflag, size = 0x8, scoped, tag = 'scoped memory for tpu_custom_call.1']
    #allocation6 [shape = 's32[2]{0}', space=sflag, size = 0x8, scoped, tag = 'scoped memory for tpu_custom_call.1']
    #allocation7 [shape = 'u8[512]{0}', space=vmem, size = 0x400, scoped, tag = 'input window, operand 5, single buffered']
    #allocation8 [shape = 's32[1]{0}', space=sflag, size = 0x4, scoped, tag = 'scoped memory for tpu_custom_call.1']
    #allocation9 [shape = 'u8[512]{0}', space=vmem, size = 0x400, scoped, tag = 'input window, operand 7, single buffered']
    #allocation10 [shape = 'u8[8192]{0}', space=vmem, size = 0x2000, scoped, tag = 'output window, operand 0']
    %24 = vsyncpa [#allocation5], 0
    %s25 = scalar_lea.sflag [#allocation5], 1
    %26 = vsyncpa %s25, 0
    %27 = vsyncpa [#allocation8], 0
    %28 = vsyncpa [#allocation6], 0
    %s29 = scalar_lea.sflag [#allocation6], 1
    %30 = vsyncpa %s29, 0
    loop: start=0, step=1, limit=4
    $region2: #{tpu_custom_call.1} parent=1 // loop_pre_header
      _
    $region3: #{tpu_custom_call.1} parent=1 // loop_header
      %s32 = sphi 0, %s36
      %p33 = scmp.ge.s32.totalorder %s32, 4
      %s42 = sphi 0, %s44
      %s45 = sphi 0, %s42
      %s46 = sphi 0, %s45
      %s62 = sphi 0, %s46
      %s68 = sphi 0, %s70
      %s71 = sphi 0, %s68
      %s72 = sphi 0, %s71
      %s88 = sphi 0, %s72
      %s92 = sphi 0, %s92
      %s94 = sphi 0, %s92
      %s95 = sphi 0, %s94
      %s109 = sphi 0, %s95
      %s113 = sphi 0, %s113
      %s115 = sphi 0, %s113
      %s116 = sphi 0, %s115
      %s130 = sphi 0, %s116
      %s134 = sphi 0, %s134
      %s136 = sphi 0, %s134
      %s137 = sphi 0, %s136
      %s151 = sphi 0, %s137
      %s155 = sphi 0, %s155
      %s157 = sphi 0, %s155
      %s158 = sphi 0, %s157
      %s172 = sphi 0, %s158
      %s176 = sphi 0, %s176
      %s178 = sphi 0, %s176
      %s179 = sphi 0, %s178
      %s193 = sphi 0, %s179
      %s197 = sphi 0, %s197
      %s199 = sphi 0, %s197
      %s200 = sphi 0, %s199
      %s214 = sphi 0, %s200
      %s218 = sphi 0, %s218
      %s220 = sphi 0, %s218
      %s221 = sphi 0, %s220
      %s235 = sphi 0, %s221
      %s239 = sphi 0, %s239
      %s241 = sphi 0, %s239
      %s242 = sphi 0, %s241
      %s256 = sphi 0, %s242
      %s260 = sphi 0, %s260
      %s262 = sphi 0, %s260
      %s263 = sphi 0, %s262
      %s277 = sphi 0, %s263
      %s281 = sphi 0, %s281
      %s283 = sphi 0, %s281
      %s284 = sphi 0, %s283
      %s298 = sphi 0, %s284
      %s302 = sphi 0, %s302
      %s304 = sphi 0, %s302
      %s305 = sphi 0, %s304
      %s319 = sphi 0, %s305
      %s323 = sphi 0, %s323
      %s325 = sphi 0, %s323
      %s326 = sphi 0, %s325
      %s340 = sphi 0, %s326
      %s344 = sphi 0, %s344
      %s346 = sphi 0, %s344
      %s347 = sphi 0, %s346
      %s361 = sphi 0, %s347
      %s367 = sphi 0, %s369
      %s370 = sphi 0, %s367
      %s371 = sphi 0, %s370
      %s387 = sphi 0, %s371
    $region4: #{tpu_custom_call.1} parent=1 // loop_header_branch
      %35 = sbr.rel (%p33) target = $region8
    $region5: #{tpu_custom_call.1} parent=1 // loop_body
      %s37 = ssub.s32 %s32, 1
      %s38 = ssub.s32 %s32, 2
      %s39 = sadd.s32 %s32, 1
      %s40 = ssub.s32 %s32, %s39
      %p41 = scmp.eq.s32.totalorder %s40, 0
      %s43 = sadd.s32 %s42, 1
      %s44 = scalar_select %p41, %s42, %s43
      %p47 = pneg %p41
      %p48 = scmp.eq.s32.totalorder %s32, 1
      %p49 = por %p47, %p48
      %p50 = scmp.ne.s32.totalorder %s42, %s45
      %p51 = scmp.eq.s32.totalorder %s32, 0
      %p52 = por %p50, %p51
      %p53 = scmp.ne.s32.totalorder %s42, %s45
      %p54 = scmp.eq.s32.totalorder %s37, 1
      %p55 = por %p53, %p54
      %p56 = scmp.ne.s32.totalorder %s45, %s46
      %p57 = scmp.eq.s32.totalorder %s37, 0
      %p58 = por %p56, %p57
      %p59 = scmp.ne.s32.totalorder %s45, %s46
      %p60 = scmp.eq.s32.totalorder %s38, 1
      %p61 = por %p59, %p60
      %p63 = scmp.ne.s32.totalorder %s46, %s62
      %p64 = scmp.eq.s32.totalorder %s38, 0
      %p65 = por %p63, %p64
      %s66 = ssub.s32 %s32, %s39
      %p67 = scmp.eq.s32.totalorder %s66, 0
      %s69 = sadd.s32 %s68, 1
      %s70 = scalar_select %p67, %s68, %s69
      %p73 = pneg %p67
      %p74 = scmp.eq.s32.totalorder %s32, 1
      %p75 = por %p73, %p74
      %p76 = scmp.ne.s32.totalorder %s68, %s71
      %p77 = scmp.eq.s32.totalorder %s32, 0
      %p78 = por %p76, %p77
      %p79 = scmp.ne.s32.totalorder %s68, %s71
      %p80 = scmp.eq.s32.totalorder %s37, 1
      %p81 = por %p79, %p80
      %p82 = scmp.ne.s32.totalorder %s71, %s72
      %p83 = scmp.eq.s32.totalorder %s37, 0
      %p84 = por %p82, %p83
      %p85 = scmp.ne.s32.totalorder %s71, %s72
      %p86 = scmp.eq.s32.totalorder %s38, 1
      %p87 = por %p85, %p86
      %p89 = scmp.ne.s32.totalorder %s72, %s88
      %p90 = scmp.eq.s32.totalorder %s38, 0
      %p91 = por %p89, %p90
      %s93 = sadd.s32 %s92, 1
      %p96 = scmp.eq.s32.totalorder %s32, 1
      %p97 = scmp.ne.s32.totalorder %s92, %s94
      %p98 = scmp.eq.s32.totalorder %s32, 0
      %p99 = por %p97, %p98
      %p100 = scmp.ne.s32.totalorder %s92, %s94
      %p101 = scmp.eq.s32.totalorder %s37, 1
      %p102 = por %p100, %p101
      %p103 = scmp.ne.s32.totalorder %s94, %s95
      %p104 = scmp.eq.s32.totalorder %s37, 0
      %p105 = por %p103, %p104
      %p106 = scmp.ne.s32.totalorder %s94, %s95
      %p107 = scmp.eq.s32.totalorder %s38, 1
      %p108 = por %p106, %p107
      %p110 = scmp.ne.s32.totalorder %s95, %s109
      %p111 = scmp.eq.s32.totalorder %s38, 0
      %p112 = por %p110, %p111
      %s114 = sadd.s32 %s113, 1
      %p117 = scmp.eq.s32.totalorder %s32, 1
      %p118 = scmp.ne.s32.totalorder %s113, %s115
      %p119 = scmp.eq.s32.totalorder %s32, 0
      %p120 = por %p118, %p119
      %p121 = scmp.ne.s32.totalorder %s113, %s115
      %p122 = scmp.eq.s32.totalorder %s37, 1
      %p123 = por %p121, %p122
      %p124 = scmp.ne.s32.totalorder %s115, %s116
      %p125 = scmp.eq.s32.totalorder %s37, 0
      %p126 = por %p124, %p125
      %p127 = scmp.ne.s32.totalorder %s115, %s116
      %p128 = scmp.eq.s32.totalorder %s38, 1
      %p129 = por %p127, %p128
      %p131 = scmp.ne.s32.totalorder %s116, %s130
      %p132 = scmp.eq.s32.totalorder %s38, 0
      %p133 = por %p131, %p132
      %s135 = sadd.s32 %s134, 1
      %p138 = scmp.eq.s32.totalorder %s32, 1
      %p139 = scmp.ne.s32.totalorder %s134, %s136
      %p140 = scmp.eq.s32.totalorder %s32, 0
      %p141 = por %p139, %p140
      %p142 = scmp.ne.s32.totalorder %s134, %s136
      %p143 = scmp.eq.s32.totalorder %s37, 1
      %p144 = por %p142, %p143
      %p145 = scmp.ne.s32.totalorder %s136, %s137
      %p146 = scmp.eq.s32.totalorder %s37, 0
      %p147 = por %p145, %p146
      %p148 = scmp.ne.s32.totalorder %s136, %s137
      %p149 = scmp.eq.s32.totalorder %s38, 1
      %p150 = por %p148, %p149
      %p152 = scmp.ne.s32.totalorder %s137, %s151
      %p153 = scmp.eq.s32.totalorder %s38, 0
      %p154 = por %p152, %p153
      %s156 = sadd.s32 %s155, 1
      %p159 = scmp.eq.s32.totalorder %s32, 1
      %p160 = scmp.ne.s32.totalorder %s155, %s157
      %p161 = scmp.eq.s32.totalorder %s32, 0
      %p162 = por %p160, %p161
      %p163 = scmp.ne.s32.totalorder %s155, %s157
      %p164 = scmp.eq.s32.totalorder %s37, 1
      %p165 = por %p163, %p164
      %p166 = scmp.ne.s32.totalorder %s157, %s158
      %p167 = scmp.eq.s32.totalorder %s37, 0
      %p168 = por %p166, %p167
      %p169 = scmp.ne.s32.totalorder %s157, %s158
      %p170 = scmp.eq.s32.totalorder %s38, 1
      %p171 = por %p169, %p170
      %p173 = scmp.ne.s32.totalorder %s158, %s172
      %p174 = scmp.eq.s32.totalorder %s38, 0
      %p175 = por %p173, %p174
      %s177 = sadd.s32 %s176, 1
      %p180 = scmp.eq.s32.totalorder %s32, 1
      %p181 = scmp.ne.s32.totalorder %s176, %s178
      %p182 = scmp.eq.s32.totalorder %s32, 0
      %p183 = por %p181, %p182
      %p184 = scmp.ne.s32.totalorder %s176, %s178
      %p185 = scmp.eq.s32.totalorder %s37, 1
      %p186 = por %p184, %p185
      %p187 = scmp.ne.s32.totalorder %s178, %s179
      %p188 = scmp.eq.s32.totalorder %s37, 0
      %p189 = por %p187, %p188
      %p190 = scmp.ne.s32.totalorder %s178, %s179
      %p191 = scmp.eq.s32.totalorder %s38, 1
      %p192 = por %p190, %p191
      %p194 = scmp.ne.s32.totalorder %s179, %s193
      %p195 = scmp.eq.s32.totalorder %s38, 0
      %p196 = por %p194, %p195
      %s198 = sadd.s32 %s197, 1
      %p201 = scmp.eq.s32.totalorder %s32, 1
      %p202 = scmp.ne.s32.totalorder %s197, %s199
      %p203 = scmp.eq.s32.totalorder %s32, 0
      %p204 = por %p202, %p203
      %p205 = scmp.ne.s32.totalorder %s197, %s199
      %p206 = scmp.eq.s32.totalorder %s37, 1
      %p207 = por %p205, %p206
      %p208 = scmp.ne.s32.totalorder %s199, %s200
      %p209 = scmp.eq.s32.totalorder %s37, 0
      %p210 = por %p208, %p209
      %p211 = scmp.ne.s32.totalorder %s199, %s200
      %p212 = scmp.eq.s32.totalorder %s38, 1
      %p213 = por %p211, %p212
      %p215 = scmp.ne.s32.totalorder %s200, %s214
      %p216 = scmp.eq.s32.totalorder %s38, 0
      %p217 = por %p215, %p216
      %s219 = sadd.s32 %s218, 1
      %p222 = scmp.eq.s32.totalorder %s32, 1
      %p223 = scmp.ne.s32.totalorder %s218, %s220
      %p224 = scmp.eq.s32.totalorder %s32, 0
      %p225 = por %p223, %p224
      %p226 = scmp.ne.s32.totalorder %s218, %s220
      %p227 = scmp.eq.s32.totalorder %s37, 1
      %p228 = por %p226, %p227
      %p229 = scmp.ne.s32.totalorder %s220, %s221
      %p230 = scmp.eq.s32.totalorder %s37, 0
      %p231 = por %p229, %p230
      %p232 = scmp.ne.s32.totalorder %s220, %s221
      %p233 = scmp.eq.s32.totalorder %s38, 1
      %p234 = por %p232, %p233
      %p236 = scmp.ne.s32.totalorder %s221, %s235
      %p237 = scmp.eq.s32.totalorder %s38, 0
      %p238 = por %p236, %p237
      %s240 = sadd.s32 %s239, 1
      %p243 = scmp.eq.s32.totalorder %s32, 1
      %p244 = scmp.ne.s32.totalorder %s239, %s241
      %p245 = scmp.eq.s32.totalorder %s32, 0
      %p246 = por %p244, %p245
      %p247 = scmp.ne.s32.totalorder %s239, %s241
      %p248 = scmp.eq.s32.totalorder %s37, 1
      %p249 = por %p247, %p248
      %p250 = scmp.ne.s32.totalorder %s241, %s242
      %p251 = scmp.eq.s32.totalorder %s37, 0
      %p252 = por %p250, %p251
      %p253 = scmp.ne.s32.totalorder %s241, %s242
      %p254 = scmp.eq.s32.totalorder %s38, 1
      %p255 = por %p253, %p254
      %p257 = scmp.ne.s32.totalorder %s242, %s256
      %p258 = scmp.eq.s32.totalorder %s38, 0
      %p259 = por %p257, %p258
      %s261 = sadd.s32 %s260, 1
      %p264 = scmp.eq.s32.totalorder %s32, 1
      %p265 = scmp.ne.s32.totalorder %s260, %s262
      %p266 = scmp.eq.s32.totalorder %s32, 0
      %p267 = por %p265, %p266
      %p268 = scmp.ne.s32.totalorder %s260, %s262
      %p269 = scmp.eq.s32.totalorder %s37, 1
      %p270 = por %p268, %p269
      %p271 = scmp.ne.s32.totalorder %s262, %s263
      %p272 = scmp.eq.s32.totalorder %s37, 0
      %p273 = por %p271, %p272
      %p274 = scmp.ne.s32.totalorder %s262, %s263
      %p275 = scmp.eq.s32.totalorder %s38, 1
      %p276 = por %p274, %p275
      %p278 = scmp.ne.s32.totalorder %s263, %s277
      %p279 = scmp.eq.s32.totalorder %s38, 0
      %p280 = por %p278, %p279
      %s282 = sadd.s32 %s281, 1
      %p285 = scmp.eq.s32.totalorder %s32, 1
      %p286 = scmp.ne.s32.totalorder %s281, %s283
      %p287 = scmp.eq.s32.totalorder %s32, 0
      %p288 = por %p286, %p287
      %p289 = scmp.ne.s32.totalorder %s281, %s283
      %p290 = scmp.eq.s32.totalorder %s37, 1
      %p291 = por %p289, %p290
      %p292 = scmp.ne.s32.totalorder %s283, %s284
      %p293 = scmp.eq.s32.totalorder %s37, 0
      %p294 = por %p292, %p293
      %p295 = scmp.ne.s32.totalorder %s283, %s284
      %p296 = scmp.eq.s32.totalorder %s38, 1
      %p297 = por %p295, %p296
      %p299 = scmp.ne.s32.totalorder %s284, %s298
      %p300 = scmp.eq.s32.totalorder %s38, 0
      %p301 = por %p299, %p300
      %s303 = sadd.s32 %s302, 1
      %p306 = scmp.eq.s32.totalorder %s32, 1
      %p307 = scmp.ne.s32.totalorder %s302, %s304
      %p308 = scmp.eq.s32.totalorder %s32, 0
      %p309 = por %p307, %p308
      %p310 = scmp.ne.s32.totalorder %s302, %s304
      %p311 = scmp.eq.s32.totalorder %s37, 1
      %p312 = por %p310, %p311
      %p313 = scmp.ne.s32.totalorder %s304, %s305
      %p314 = scmp.eq.s32.totalorder %s37, 0
      %p315 = por %p313, %p314
      %p316 = scmp.ne.s32.totalorder %s304, %s305
      %p317 = scmp.eq.s32.totalorder %s38, 1
      %p318 = por %p316, %p317
      %p320 = scmp.ne.s32.totalorder %s305, %s319
      %p321 = scmp.eq.s32.totalorder %s38, 0
      %p322 = por %p320, %p321
      %s324 = sadd.s32 %s323, 1
      %p327 = scmp.eq.s32.totalorder %s32, 1
      %p328 = scmp.ne.s32.totalorder %s323, %s325
      %p329 = scmp.eq.s32.totalorder %s32, 0
      %p330 = por %p328, %p329
      %p331 = scmp.ne.s32.totalorder %s323, %s325
      %p332 = scmp.eq.s32.totalorder %s37, 1
      %p333 = por %p331, %p332
      %p334 = scmp.ne.s32.totalorder %s325, %s326
      %p335 = scmp.eq.s32.totalorder %s37, 0
      %p336 = por %p334, %p335
      %p337 = scmp.ne.s32.totalorder %s325, %s326
      %p338 = scmp.eq.s32.totalorder %s38, 1
      %p339 = por %p337, %p338
      %p341 = scmp.ne.s32.totalorder %s326, %s340
      %p342 = scmp.eq.s32.totalorder %s38, 0
      %p343 = por %p341, %p342
      %s345 = sadd.s32 %s344, 1
      %p348 = scmp.eq.s32.totalorder %s32, 1
      %p349 = scmp.ne.s32.totalorder %s344, %s346
      %p350 = scmp.eq.s32.totalorder %s32, 0
      %p351 = por %p349, %p350
      %p352 = scmp.ne.s32.totalorder %s344, %s346
      %p353 = scmp.eq.s32.totalorder %s37, 1
      %p354 = por %p352, %p353
      %p355 = scmp.ne.s32.totalorder %s346, %s347
      %p356 = scmp.eq.s32.totalorder %s37, 0
      %p357 = por %p355, %p356
      %p358 = scmp.ne.s32.totalorder %s346, %s347
      %p359 = scmp.eq.s32.totalorder %s38, 1
      %p360 = por %p358, %p359
      %p362 = scmp.ne.s32.totalorder %s347, %s361
      %p363 = scmp.eq.s32.totalorder %s38, 0
      %p364 = por %p362, %p363
      %s365 = ssub.s32 %s32, %s39
      %p366 = scmp.eq.s32.totalorder %s365, 0
      %s368 = sadd.s32 %s367, 1
      %s369 = scalar_select %p366, %s367, %s368
      %p372 = pneg %p366
      %p373 = scmp.eq.s32.totalorder %s32, 1
      %p374 = por %p372, %p373
      %p375 = scmp.ne.s32.totalorder %s367, %s370
      %p376 = scmp.eq.s32.totalorder %s32, 0
      %p377 = por %p375, %p376
      %p378 = scmp.ne.s32.totalorder %s367, %s370
      %p379 = scmp.eq.s32.totalorder %s37, 1
      %p380 = por %p378, %p379
      %p381 = scmp.ne.s32.totalorder %s370, %s371
      %p382 = scmp.eq.s32.totalorder %s37, 0
      %p383 = por %p381, %p382
      %p384 = scmp.ne.s32.totalorder %s370, %s371
      %p385 = scmp.eq.s32.totalorder %s38, 1
      %p386 = por %p384, %p385
      %p388 = scmp.ne.s32.totalorder %s371, %s387
      %p389 = scmp.eq.s32.totalorder %s38, 0
      %p390 = por %p388, %p389
      %p391 = scmp.le.s32.totalorder 1, %s32
      %p392 = scmp.lt.s32.totalorder %s32, 3
      %p393 = pnand %p391, %p392
      %p394 = pneg %p393
      // Predicated region
      $region9: #{tpu_custom_call.1} parent=5 // pred_check
        _
      $region10: #{tpu_custom_call.1} parent=5 // pred_check_branch
        %396 = sbr.rel (%p393) target = $region12
      $region11: #{tpu_custom_call.1} parent=5 // pred_region
        %s397 = ssub.s32 %s32, 1
        // Predicated region
        $region13: #{tpu_custom_call.1} parent=11 // pred_check
          %p398 = pneg %p105
        $region14: #{tpu_custom_call.1} parent=11 // pred_check_branch
          %400 = sbr.rel (%p398) target = $region16
        $region15: #{tpu_custom_call.1} parent=11 // pred_region
          _
        $region16: #{tpu_custom_call.1} parent=11 // pred_fallthru
          _
        // Predicated region
        $region17: #{tpu_custom_call.1} parent=11 // pred_check
          %p401 = pneg %p126
        $region18: #{tpu_custom_call.1} parent=11 // pred_check_branch
          %403 = sbr.rel (%p401) target = $region20
        $region19: #{tpu_custom_call.1} parent=11 // pred_region
          _
        $region20: #{tpu_custom_call.1} parent=11 // pred_fallthru
          _
        // Predicated region
        $region21: #{tpu_custom_call.1} parent=11 // pred_check
          %p404 = pneg %p147
        $region22: #{tpu_custom_call.1} parent=11 // pred_check_branch
          %406 = sbr.rel (%p404) target = $region24
        $region23: #{tpu_custom_call.1} parent=11 // pred_region
          _
        $region24: #{tpu_custom_call.1} parent=11 // pred_fallthru
          _
        // Predicated region
        $region25: #{tpu_custom_call.1} parent=11 // pred_check
          %p407 = pneg %p168
        $region26: #{tpu_custom_call.1} parent=11 // pred_check_branch
          %409 = sbr.rel (%p407) target = $region28
        $region27: #{tpu_custom_call.1} parent=11 // pred_region
          %s411 = ssub.s32 16, 16
          %412 = vsyncadd [#allocation8], %s411
          %s414 = sshll.u32 [#allocation7], 4
          %s415 = int_to_ptr.vmem [resolvable:$true] %s414
          %417 = dma.hbm_to_vmem [thread:$0]  %s5, 16, %s415, [#allocation8]
        $region28: #{tpu_custom_call.1} parent=11 // pred_fallthru
          _
        // Predicated region
        $region29: #{tpu_custom_call.1} parent=11 // pred_check
          %p418 = pneg %p189
        $region30: #{tpu_custom_call.1} parent=11 // pred_check_branch
          %420 = sbr.rel (%p418) target = $region32
        $region31: #{tpu_custom_call.1} parent=11 // pred_region
          _
        $region32: #{tpu_custom_call.1} parent=11 // pred_fallthru
          _
        // Predicated region
        $region33: #{tpu_custom_call.1} parent=11 // pred_check
          %p421 = pneg %p210
        $region34: #{tpu_custom_call.1} parent=11 // pred_check_branch
          %423 = sbr.rel (%p421) target = $region36
        $region35: #{tpu_custom_call.1} parent=11 // pred_region
          %s425 = ssub.s32 16, 16
          %426 = vsyncadd [#allocation8], %s425
          %s428 = sshll.u32 [#allocation9], 4
          %s429 = int_to_ptr.vmem [resolvable:$true] %s428
          %431 = dma.hbm_to_vmem [thread:$0]  %s7, 16, %s429, [#allocation8]
        $region36: #{tpu_custom_call.1} parent=11 // pred_fallthru
          _
        // Predicated region
        $region37: #{tpu_custom_call.1} parent=11 // pred_check
          %p432 = pneg %p231
        $region38: #{tpu_custom_call.1} parent=11 // pred_check_branch
          %434 = sbr.rel (%p432) target = $region40
        $region39: #{tpu_custom_call.1} parent=11 // pred_region
          _
        $region40: #{tpu_custom_call.1} parent=11 // pred_fallthru
          _
        // Predicated region
        $region41: #{tpu_custom_call.1} parent=11 // pred_check
          %p435 = pneg %p252
        $region42: #{tpu_custom_call.1} parent=11 // pred_check_branch
          %437 = sbr.rel (%p435) target = $region44
        $region43: #{tpu_custom_call.1} parent=11 // pred_region
          _
        $region44: #{tpu_custom_call.1} parent=11 // pred_fallthru
          _
        // Predicated region
        $region45: #{tpu_custom_call.1} parent=11 // pred_check
          %p438 = pneg %p273
        $region46: #{tpu_custom_call.1} parent=11 // pred_check_branch
          %440 = sbr.rel (%p438) target = $region48
        $region47: #{tpu_custom_call.1} parent=11 // pred_region
          _
        $region48: #{tpu_custom_call.1} parent=11 // pred_fallthru
          _
        // Predicated region
        $region49: #{tpu_custom_call.1} parent=11 // pred_check
          %p441 = pneg %p294
        $region50: #{tpu_custom_call.1} parent=11 // pred_check_branch
          %443 = sbr.rel (%p441) target = $region52
        $region51: #{tpu_custom_call.1} parent=11 // pred_region
          _
        $region52: #{tpu_custom_call.1} parent=11 // pred_fallthru
          _
        // Predicated region
        $region53: #{tpu_custom_call.1} parent=11 // pred_check
          %p444 = pneg %p315
        $region54: #{tpu_custom_call.1} parent=11 // pred_check_branch
          %446 = sbr.rel (%p444) target = $region56
        $region55: #{tpu_custom_call.1} parent=11 // pred_region
          _
        $region56: #{tpu_custom_call.1} parent=11 // pred_fallthru
          _
        // Predicated region
        $region57: #{tpu_custom_call.1} parent=11 // pred_check
          %p447 = pneg %p336
        $region58: #{tpu_custom_call.1} parent=11 // pred_check_branch
          %449 = sbr.rel (%p447) target = $region60
        $region59: #{tpu_custom_call.1} parent=11 // pred_region
          _
        $region60: #{tpu_custom_call.1} parent=11 // pred_fallthru
          _
        // Predicated region
        $region61: #{tpu_custom_call.1} parent=11 // pred_check
          %p450 = pneg %p357
        $region62: #{tpu_custom_call.1} parent=11 // pred_check_branch
          %452 = sbr.rel (%p450) target = $region64
        $region63: #{tpu_custom_call.1} parent=11 // pred_region
          _
        $region64: #{tpu_custom_call.1} parent=11 // pred_fallthru
          _
      $region12: #{tpu_custom_call.1} parent=5 // pred_fallthru
        _
      %p453 = scmp.lt.s32.totalorder %s32, 2
      // Predicated region
      $region65: #{tpu_custom_call.1} parent=5 // pred_check
        %p454 = pneg %p453
      $region66: #{tpu_custom_call.1} parent=5 // pred_check_branch
        %456 = sbr.rel (%p454) target = $region68
      $region67: #{tpu_custom_call.1} parent=5 // pred_region
        // Predicated region
        $region69: #{tpu_custom_call.1} parent=67 // pred_check
          %p457 = pneg %p52
        $region70: #{tpu_custom_call.1} parent=67 // pred_check_branch
          %459 = sbr.rel (%p457) target = $region72
        $region71: #{tpu_custom_call.1} parent=67 // pred_region
          %s460 = sand.u32 %s42, 1
          %s461 = scalar_lea.sflag [#allocation5], %s460
          %s462 = sand.u32 %s42, 1
          %s463 = smul.addr %s462, 4
          %s464 = scalar_lea.vmem [#allocation4], %s463
          %s466 = ssub.s32 64, 64
          %467 = vsyncadd %s461, %s466
          %s468 = smul.addr %s32, 64
          %s469 = scalar_lea.hbm %s0, %s468
          %s471 = sshll.u32 %s464, 4
          %s472 = int_to_ptr.vmem [resolvable:$true] %s471
          %474 = dma.hbm_to_vmem [thread:$0]  %s469, 64, %s472, %s461
        $region72: #{tpu_custom_call.1} parent=67 // pred_fallthru
          _
        // Predicated region
        $region73: #{tpu_custom_call.1} parent=67 // pred_check
          %p475 = pneg %p78
        $region74: #{tpu_custom_call.1} parent=67 // pred_check_branch
          %477 = sbr.rel (%p475) target = $region76
        $region75: #{tpu_custom_call.1} parent=67 // pred_region
          %p478 = scmp.lt.s32.totalorder %s32, 1
          %s479 = scalar_select %p478, %s32, 1
          %s480 = smul.addr %s479, 8
          %s481 = scalar_lea.vmem %s1, %s480
        $region76: #{tpu_custom_call.1} parent=67 // pred_fallthru
          _
      $region68: #{tpu_custom_call.1} parent=5 // pred_fallthru
        _
      %p482 = scmp.le.s32.totalorder 1, %s32
      %p483 = scmp.lt.s32.totalorder %s32, 3
      %p484 = pnand %p482, %p483
      %p485 = pneg %p484
      // Predicated region
      $region77: #{tpu_custom_call.1} parent=5 // pred_check
        _
      $region78: #{tpu_custom_call.1} parent=5 // pred_check_branch
        %487 = sbr.rel (%p484) target = $region80
      $region79: #{tpu_custom_call.1} parent=5 // pred_region
        %s488 = ssub.s32 %s32, 1
        %s489 = sand.u32 %s45, 1
        %s490 = scalar_lea.sflag [#allocation5], %s489
        %s491 = sand.u32 %s45, 1
        %s492 = smul.addr %s491, 4
        %s493 = scalar_lea.vmem [#allocation4], %s492
        // Predicated region
        $region81: #{tpu_custom_call.1} parent=79 // pred_check
          %p494 = pneg %p58
        $region82: #{tpu_custom_call.1} parent=79 // pred_check_branch
          %496 = sbr.rel (%p494) target = $region84
        $region83: #{tpu_custom_call.1} parent=79 // pred_region
          %497 = dma.done %s490, 64
        $region84: #{tpu_custom_call.1} parent=79 // pred_fallthru
          _
        // Predicated region
        $region85: #{tpu_custom_call.1} parent=79 // pred_check
          %p498 = pneg %p168
        $region86: #{tpu_custom_call.1} parent=79 // pred_check_branch
          %500 = sbr.rel (%p498) target = $region88
        $region87: #{tpu_custom_call.1} parent=79 // pred_region
          %501 = dma.done [#allocation8], 16
        $region88: #{tpu_custom_call.1} parent=79 // pred_fallthru
          _
        // Predicated region
        $region89: #{tpu_custom_call.1} parent=79 // pred_check
          %p502 = pneg %p210
        $region90: #{tpu_custom_call.1} parent=79 // pred_check_branch
          %504 = sbr.rel (%p502) target = $region92
        $region91: #{tpu_custom_call.1} parent=79 // pred_region
          %505 = dma.done [#allocation8], 16
        $region92: #{tpu_custom_call.1} parent=79 // pred_fallthru
          _
        %s506 = sand.u32 %s45, 1
        %s507 = scalar_lea.sflag [#allocation5], %s506
        %s508 = sand.u32 %s45, 1
        %s509 = smul.addr %s508, 4
        %s510 = scalar_lea.vmem [#allocation4], %s509
        %p511 = pneg %p58
        %p512 = pneg %p55
        %p513 = scmp.lt.s32.totalorder %s37, 1
        %s514 = scalar_select %p513, %s37, 1
        %s515 = smul.addr %s514, 8
        %s516 = scalar_lea.vmem %s1, %s515
        %p517 = pneg %p84
        %p518 = pneg %p81
        %p519 = pneg %p105
        %p520 = pneg %p102
        %p521 = pneg %p126
        %p522 = pneg %p123
        %p523 = pneg %p147
        %p524 = pneg %p144
        %p525 = pneg %p168
        %p526 = pneg %p165
        %p527 = pneg %p189
        %p528 = pneg %p186
        %p529 = pneg %p210
        %p530 = pneg %p207
        %p531 = pneg %p231
        %p532 = pneg %p228
        %p533 = pneg %p252
        %p534 = pneg %p249
        %p535 = pneg %p273
        %p536 = pneg %p270
        %p537 = pneg %p294
        %p538 = pneg %p291
        %p539 = pneg %p315
        %p540 = pneg %p312
        %p541 = pneg %p336
        %p542 = pneg %p333
        %p543 = pneg %p357
        %p544 = pneg %p354
        %p545 = pneg %p383
        %p546 = pneg %p380
        %s547 = sand.u32 %s370, 1
        %s548 = scalar_lea.sflag [#allocation6], %s547
        %s549 = sand.u32 %s370, 1
        %s550 = smul.addr %s549, 8
        %s551 = scalar_lea.vmem [#allocation10], %s550
        %p552 = scmp.lt.s32.totalorder %s37, 1
        %s553 = scalar_select %p552, %s37, 1
        %s554 = smul.addr %s553, 8
        %s555 = scalar_lea.vmem %s1, %s554
        %v557 = vld [vmem:[%s493] sm:$0xf]
        %v558 = vld [vmem:[%s2] sm:$0xf]
        %v559 = vld [vmem:[%s2 + $0x4] sm:$0xf]
        %v560 = vld [vmem:[%s2 + $0x8] sm:$0xf]
        %v561 = vld [vmem:[%s2 + $0xc] sm:$0xf]
        %v562 = vld [vmem:[%s3] sm:$0x1]
        %v564 = vlaneseq
        %v565 = vshrl.u32 %v564, 7
        %v566 = vsub.s32 0, %v565
        %v567 = vrot.slane %v562, %v566
        %v573 = vunpack.c.l.b16 %v558
        %v574 = vunpack.c.l.b16 %v559
        %v575 = vunpack.c.l.b16 %v560
        %v576 = vunpack.c.l.b16 %v561
        %v577 = vpack.c.b16 %v574, %v573
        %v578 = vpack.c.b16 %v576, %v575
        %vm581 = vcmask 261120
        %v583 = vsel %vm581, %v557, 0
        %585 = vmatprep.subr.bf16.mxu0 0
        %586 = vmatpush1.bf16.msra.mxu0 0
        %587 = vmatprep.subr.bf16.mxu0 0
        %588 = vmatpush1.bf16.msra.mxu0 0
        %589 = vmatprep.subr.bf16.mxu0 0
        %590 = vmatpush1.bf16.msra.mxu0 0
        %591 = vmatprep.subr.bf16.mxu0 0
        %592 = vmatpush1.bf16.msra.mxu0 0
        %593 = vmatprep.subr.bf16.mxu0 0
        %594 = vmatpush1.bf16.msra.mxu0 0
        %595 = vmatprep.subr.bf16.mxu0 0
        %596 = vmatpush1.bf16.msra.mxu0 0
        %597 = vmatprep.subr.bf16.mxu0 0
        %598 = vmatpush1.bf16.msra.mxu0 %v578
        %599 = vmatprep.subr.bf16.mxu0 0
        %600 = vmatpush1.bf16.msra.mxu0 %v577
        %601 = vmatprep.subr.bf16.mxu0 0
        %602 = vmatpush2.bf16.msra.mxu0 0
        %603 = vmatprep.subr.bf16.mxu0 0
        %604 = vmatpush2.bf16.msra.mxu0 0
        %605 = vmatprep.subr.bf16.mxu0 0
        %606 = vmatpush2.bf16.msra.mxu0 0
        %607 = vmatprep.subr.bf16.mxu0 0
        %608 = vmatpush2.bf16.msra.mxu0 0
        %609 = vmatprep.subr.bf16.mxu0 0
        %610 = vmatpush2.bf16.msra.mxu0 0
        %611 = vmatprep.subr.bf16.mxu0 0
        %612 = vmatpush2.bf16.msra.mxu0 0
        %613 = vmatprep.subr.bf16.mxu0 0
        %614 = vmatpush2.bf16.msra.mxu0 0
        %615 = vmatprep.subr.bf16.mxu0 0
        %616 = vmatpush2.bf16.msra.mxu0 0
        %617 = vmatprep.mubr.bf16.mxu0 0
        %618 = vmatmul.mubr.bf16.gmra.mxu0 %v583
        %v619 = vpop.f32.mrf.mxu0
        %v620 = vadd.f32 %v567, %v619
        %v621 = vpop.f32.mrf.mxu0
        %v622 = vpop.f32.mrf.mxu0
        %v623 = vpop.f32.mrf.mxu0
        %624 = vdwg.mxu0
        %v625 = vmax.f32 %v620, 0.0
        %v626 = vpack.c.bf16 %v625, %v625
        %v627 = vld [vmem:[%s4] sm:$0xf]
        %v628 = vld [vmem:[%s4 + $0x4] sm:$0xf]
        %v629 = vld [vmem:[%s4 + $0x8] sm:$0xf]
        %v630 = vld [vmem:[%s4 + $0xc] sm:$0xf]
        %v631 = vld [vmem:[#allocation7] sm:$0x1]
        %v633 = vlaneseq
        %v634 = vshrl.u32 %v633, 7
        %v635 = vsub.s32 0, %v634
        %v636 = vrot.slane %v631, %v635
        %v642 = vunpack.c.l.b16 %v627
        %v643 = vunpack.c.l.b16 %v628
        %v644 = vunpack.c.l.b16 %v629
        %v645 = vunpack.c.l.b16 %v630
        %v646 = vpack.c.b16 %v643, %v642
        %v647 = vpack.c.b16 %v645, %v644
        %v651 = vsel %vm581, %v626, 0
        %653 = vmatprep.subr.bf16.mxu0 0
        %654 = vmatpush1.bf16.msra.mxu0 0
        %655 = vmatprep.subr.bf16.mxu0 0
        %656 = vmatpush1.bf16.msra.mxu0 0
        %657 = vmatprep.subr.bf16.mxu0 0
        %658 = vmatpush1.bf16.msra.mxu0 0
        %659 = vmatprep.subr.bf16.mxu0 0
        %660 = vmatpush1.bf16.msra.mxu0 0
        %661 = vmatprep.subr.bf16.mxu0 0
        %662 = vmatpush1.bf16.msra.mxu0 0
        %663 = vmatprep.subr.bf16.mxu0 0
        %664 = vmatpush1.bf16.msra.mxu0 0
        %665 = vmatprep.subr.bf16.mxu0 0
        %666 = vmatpush1.bf16.msra.mxu0 %v647
        %667 = vmatprep.subr.bf16.mxu0 0
        %668 = vmatpush1.bf16.msra.mxu0 %v646
        %669 = vmatprep.subr.bf16.mxu0 0
        %670 = vmatpush2.bf16.msra.mxu0 0
        %671 = vmatprep.subr.bf16.mxu0 0
        %672 = vmatpush2.bf16.msra.mxu0 0
        %673 = vmatprep.subr.bf16.mxu0 0
        %674 = vmatpush2.bf16.msra.mxu0 0
        %675 = vmatprep.subr.bf16.mxu0 0
        %676 = vmatpush2.bf16.msra.mxu0 0
        %677 = vmatprep.subr.bf16.mxu0 0
        %678 = vmatpush2.bf16.msra.mxu0 0
        %679 = vmatprep.subr.bf16.mxu0 0
        %680 = vmatpush2.bf16.msra.mxu0 0
        %681 = vmatprep.subr.bf16.mxu0 0
        %682 = vmatpush2.bf16.msra.mxu0 0
        %683 = vmatprep.subr.bf16.mxu0 0
        %684 = vmatpush2.bf16.msra.mxu0 0
        %685 = vmatprep.mubr.bf16.mxu0 0
        %686 = vmatmul.mubr.bf16.gmra.mxu0 %v651
        %v687 = vpop.f32.mrf.mxu0
        %v688 = vadd.f32 %v636, %v687
        %v689 = vpop.f32.mrf.mxu0
        %v690 = vpop.f32.mrf.mxu0
        %v691 = vpop.f32.mrf.mxu0
        %692 = vdwg.mxu0
        %v693 = vmax.f32 %v688, 0.0
        %v694 = vpack.c.bf16 %v693, %v693
        %v695 = vld [vmem:[%s6] sm:$0xf]
        %v696 = vld [vmem:[%s6 + $0x4] sm:$0xf]
        %v699 = vunpack.c.l.b16 %v695
        %v700 = vunpack.c.l.b16 %v696
        %v701 = vpack.c.b16 %v700, %v699
        %vm703 = vcmask 130048
        %v705 = vsel %vm703, %v694, 0
        %707 = vmatprep.subr.bf16.mxu0 0
        %708 = vmatpush1.bf16.msra.mxu0 0
        %709 = vmatprep.subr.bf16.mxu0 0
        %710 = vmatpush1.bf16.msra.mxu0 0
        %711 = vmatprep.subr.bf16.mxu0 0
        %712 = vmatpush1.bf16.msra.mxu0 0
        %713 = vmatprep.subr.bf16.mxu0 0
        %714 = vmatpush1.bf16.msra.mxu0 0
        %715 = vmatprep.subr.bf16.mxu0 0
        %716 = vmatpush1.bf16.msra.mxu0 0
        %717 = vmatprep.subr.bf16.mxu0 0
        %718 = vmatpush1.bf16.msra.mxu0 0
        %719 = vmatprep.subr.bf16.mxu0 0
        %720 = vmatpush1.bf16.msra.mxu0 0
        %721 = vmatprep.subr.bf16.mxu0 0
        %722 = vmatpush1.bf16.msra.mxu0 %v701
        %723 = vmatprep.subr.bf16.mxu0 0
        %724 = vmatpush2.bf16.msra.mxu0 0
        %725 = vmatprep.subr.bf16.mxu0 0
        %726 = vmatpush2.bf16.msra.mxu0 0
        %727 = vmatprep.subr.bf16.mxu0 0
        %728 = vmatpush2.bf16.msra.mxu0 0
        %729 = vmatprep.subr.bf16.mxu0 0
        %730 = vmatpush2.bf16.msra.mxu0 0
        %731 = vmatprep.subr.bf16.mxu0 0
        %732 = vmatpush2.bf16.msra.mxu0 0
        %733 = vmatprep.subr.bf16.mxu0 0
        %734 = vmatpush2.bf16.msra.mxu0 0
        %735 = vmatprep.subr.bf16.mxu0 0
        %736 = vmatpush2.bf16.msra.mxu0 0
        %737 = vmatprep.subr.bf16.mxu0 0
        %738 = vmatpush2.bf16.msra.mxu0 0
        %739 = vmatprep.mubr.bf16.mxu0 0
        %740 = vmatmul.mubr.bf16.gmra.mxu0 %v705
        %v741 = vpop.f32.mrf.mxu0
        %v742 = vadd.f32 0.0, %v741
        %v743 = vpop.f32.mrf.mxu0
        %v744 = vpop.f32.mrf.mxu0
        %v745 = vpop.f32.mrf.mxu0
        %746 = vdwg.mxu0
        %v747 = vld [vmem:[#allocation9] sm:$0x1]
        %v749 = vlaneseq
        %v750 = vshrl.u32 %v749, 7
        %v751 = vsub.s32 0, %v750
        %v752 = vrot.slane %v747, %v751
        %v754 = vadd.f32 %v742, %v752
        %v755 = vmax.f32 %v754, 0.0
        %v756 = vpack.c.bf16 %v755, %v755
        %v757 = vld [vmem:[%s8] sm:$0xf]
        %v758 = vld [vmem:[%s8 + $0x4] sm:$0xf]
        %v759 = vld [vmem:[%s9] sm:$0x1]
        %v761 = vlaneseq
        %v762 = vshrl.u32 %v761, 7
        %v763 = vsub.s32 0, %v762
        %v764 = vrot.slane %v759, %v763
        %v768 = vunpack.c.l.b16 %v757
        %v769 = vunpack.c.l.b16 %v758
        %v770 = vpack.c.b16 %v769, %v768
        %v773 = vsel %vm703, %v756, 0
        %775 = vmatprep.subr.bf16.mxu0 0
        %776 = vmatpush1.bf16.msra.mxu0 0
        %777 = vmatprep.subr.bf16.mxu0 0
        %778 = vmatpush1.bf16.msra.mxu0 0
        %779 = vmatprep.subr.bf16.mxu0 0
        %780 = vmatpush1.bf16.msra.mxu0 0
        %781 = vmatprep.subr.bf16.mxu0 0
        %782 = vmatpush1.bf16.msra.mxu0 0
        %783 = vmatprep.subr.bf16.mxu0 0
        %784 = vmatpush1.bf16.msra.mxu0 0
        %785 = vmatprep.subr.bf16.mxu0 0
        %786 = vmatpush1.bf16.msra.mxu0 0
        %787 = vmatprep.subr.bf16.mxu0 0
        %788 = vmatpush1.bf16.msra.mxu0 0
        %789 = vmatprep.subr.bf16.mxu0 0
        %790 = vmatpush1.bf16.msra.mxu0 %v770
        %791 = vmatprep.subr.bf16.mxu0 0
        %792 = vmatpush2.bf16.msra.mxu0 0
        %793 = vmatprep.subr.bf16.mxu0 0
        %794 = vmatpush2.bf16.msra.mxu0 0
        %795 = vmatprep.subr.bf16.mxu0 0
        %796 = vmatpush2.bf16.msra.mxu0 0
        %797 = vmatprep.subr.bf16.mxu0 0
        %798 = vmatpush2.bf16.msra.mxu0 0
        %799 = vmatprep.subr.bf16.mxu0 0
        %800 = vmatpush2.bf16.msra.mxu0 0
        %801 = vmatprep.subr.bf16.mxu0 0
        %802 = vmatpush2.bf16.msra.mxu0 0
        %803 = vmatprep.subr.bf16.mxu0 0
        %804 = vmatpush2.bf16.msra.mxu0 0
        %805 = vmatprep.subr.bf16.mxu0 0
        %806 = vmatpush2.bf16.msra.mxu0 0
        %807 = vmatprep.mubr.bf16.mxu0 0
        %808 = vmatmul.mubr.bf16.gmra.mxu0 %v773
        %v809 = vpop.f32.mrf.mxu0
        %v810 = vadd.f32 %v764, %v809
        %v811 = vpop.f32.mrf.mxu0
        %v812 = vpop.f32.mrf.mxu0
        %v813 = vpop.f32.mrf.mxu0
        %814 = vdwg.mxu0
        %v815 = vmax.f32 %v810, 0.0
        %v816 = vpack.c.bf16 %v815, %v815
        %v817 = vld [vmem:[%s10] sm:$0xf]
        %v818 = vld [vmem:[%s10 + $0x4] sm:$0xf]
        %v819 = vld [vmem:[%s10 + $0x8] sm:$0xf]
        %v820 = vld [vmem:[%s10 + $0xc] sm:$0xf]
        %v821 = vld [vmem:[%s11] sm:$0x1]
        %v823 = vlaneseq
        %v824 = vshrl.u32 %v823, 7
        %v825 = vsub.s32 0, %v824
        %v826 = vrot.slane %v821, %v825
        %v832 = vunpack.c.l.b16 %v817
        %v833 = vunpack.c.l.b16 %v818
        %v834 = vunpack.c.l.b16 %v819
        %v835 = vunpack.c.l.b16 %v820
        %v836 = vpack.c.b16 %v833, %v832
        %v837 = vpack.c.b16 %v835, %v834
        %v841 = vsel %vm581, %v816, 0
        %843 = vmatprep.subr.bf16.mxu0 0
        %844 = vmatpush1.bf16.msra.mxu0 0
        %845 = vmatprep.subr.bf16.mxu0 0
        %846 = vmatpush1.bf16.msra.mxu0 0
        %847 = vmatprep.subr.bf16.mxu0 0
        %848 = vmatpush1.bf16.msra.mxu0 0
        %849 = vmatprep.subr.bf16.mxu0 0
        %850 = vmatpush1.bf16.msra.mxu0 0
        %851 = vmatprep.subr.bf16.mxu0 0
        %852 = vmatpush1.bf16.msra.mxu0 0
        %853 = vmatprep.subr.bf16.mxu0 0
        %854 = vmatpush1.bf16.msra.mxu0 0
        %855 = vmatprep.subr.bf16.mxu0 0
        %856 = vmatpush1.bf16.msra.mxu0 %v837
        %857 = vmatprep.subr.bf16.mxu0 0
        %858 = vmatpush1.bf16.msra.mxu0 %v836
        %859 = vmatprep.subr.bf16.mxu0 0
        %860 = vmatpush2.bf16.msra.mxu0 0
        %861 = vmatprep.subr.bf16.mxu0 0
        %862 = vmatpush2.bf16.msra.mxu0 0
        %863 = vmatprep.subr.bf16.mxu0 0
        %864 = vmatpush2.bf16.msra.mxu0 0
        %865 = vmatprep.subr.bf16.mxu0 0
        %866 = vmatpush2.bf16.msra.mxu0 0
        %867 = vmatprep.subr.bf16.mxu0 0
        %868 = vmatpush2.bf16.msra.mxu0 0
        %869 = vmatprep.subr.bf16.mxu0 0
        %870 = vmatpush2.bf16.msra.mxu0 0
        %871 = vmatprep.subr.bf16.mxu0 0
        %872 = vmatpush2.bf16.msra.mxu0 0
        %873 = vmatprep.subr.bf16.mxu0 0
        %874 = vmatpush2.bf16.msra.mxu0 0
        %875 = vmatprep.mubr.bf16.mxu0 0
        %876 = vmatmul.mubr.bf16.gmra.mxu0 %v841
        %v877 = vpop.f32.mrf.mxu0
        %v878 = vadd.f32 %v826, %v877
        %v879 = vpop.f32.mrf.mxu0
        %v880 = vpop.f32.mrf.mxu0
        %v881 = vpop.f32.mrf.mxu0
        %882 = vdwg.mxu0
        %v883 = vmul.f32 %v693, %v693
        %v884 = vsel %vm703, %v883, 0.0
        %885 = vadd.xlane.f32.xlu0 %v884
        %v886 = vpop.xlane.xlu0 %885
        %v887 = vld [vmem:[%s12] sm:$0x1]
        %v889 = vlaneseq
        %v890 = vshrl.u32 %v889, 7
        %v891 = vsub.s32 0, %v890
        %v892 = vrot.slane %v887, %v891
        %v894 = vadd.f32 %v886, %v892
        %v895 = vmul.f32 %v742, 2.0
        %897 = vrot.lane.b32.xlu0 %v895, 112
        %v898 = vpop.permute.xlu0 %897
        %v900 = vsub.f32 %v894, %v898
        %v901 = vmax.f32 %v900, 0.0
        %v902 = vadd.f32 %v901, 1.0
        %v903 = vrcp.pop %v902
        %vm904 = vcmask 31744
        %v905 = vsel %vm904, %v903, 0.0
        %906 = vadd.xlane.f32.xlu0 %v905
        %v907 = vpop.xlane.xlu0 %906
        %v908 = vrcp.pop %v907
        %v909 = vmul.f32 %v903, %v908
        %v910 = vld [vmem:[%s555] sm:$0xff]
        %v911 = vld [vmem:[#allocation2] sm:$0x1]
        %v913 = vlaneseq
        %v914 = vshrl.u32 %v913, 7
        %v915 = vsub.s32 0, %v914
        %v916 = vrot.slane %v911, %v915
        %v918 = vmul.f32 %v910, %v916
        %920 = vrot.lane.b32.xlu0 %v918, 20
        %v921 = vpop.permute.xlu0 %920
        %v923 = vadd.f32 %v742, %v921
        %v924 = vld [vmem:[#allocation3] sm:$0x1]
        %v926 = vlaneseq
        %v927 = vshrl.u32 %v926, 7
        %v928 = vsub.s32 0, %v927
        %v929 = vrot.slane %v924, %v928
        %930 = vrot.lane.b32.xlu0 %v929, 20
        %v931 = vpop.permute.xlu0 %930
        %v933 = vadd.f32 %v923, %v931
        %935 = vrot.lane.b32.xlu0 %v909, 32
        %v936 = vpop.permute.xlu0 %935
        %939 = vrot.lane.b32.xlu0 %v933, 16
        %v940 = vpop.permute.xlu0 %939
        %v942 = vsel %vm581, %v878, %v936
        %vm943 = vcmask 293888
        %v944 = vsel %vm943, %v942, %v940
        %vm945 = vcmask 302080
        %v946 = vsel %vm945, %v944, 0.0
        %947 = vst [vmem:[%s551] sm:$0xff] %v946
        %s948 = sand.u32 %s370, 1
        %s949 = scalar_lea.sflag [#allocation6], %s948
        %s950 = sand.u32 %s370, 1
        %s951 = smul.addr %s950, 8
        %s952 = scalar_lea.vmem [#allocation10], %s951
        // Predicated region
        $region93: #{tpu_custom_call.1} parent=79 // pred_check
          %p953 = pneg %p380
        $region94: #{tpu_custom_call.1} parent=79 // pred_check_branch
          %955 = sbr.rel (%p953) target = $region96
        $region95: #{tpu_custom_call.1} parent=79 // pred_region
          %s957 = ssub.s32 128, 128
          %958 = vsyncadd %s949, %s957
          %s959 = smul.addr %s37, 128
          %s960 = scalar_lea.hbm %s15, %s959
          %s962 = sshll.u32 %s952, 4
          %s963 = int_to_ptr.vmem [resolvable:$true] %s962
          %965 = dma.vmem_to_hbm [thread:$0]  %s963, 128, %s960, %s949
        $region96: #{tpu_custom_call.1} parent=79 // pred_fallthru
          _
      $region80: #{tpu_custom_call.1} parent=5 // pred_fallthru
        _
      %p966 = scmp.le.s32.totalorder 2, %s32
      // Predicated region
      $region97: #{tpu_custom_call.1} parent=5 // pred_check
        %p967 = pneg %p966
      $region98: #{tpu_custom_call.1} parent=5 // pred_check_branch
        %969 = sbr.rel (%p967) target = $region100
      $region99: #{tpu_custom_call.1} parent=5 // pred_region
        %s970 = ssub.s32 %s32, 2
        // Predicated region
        $region101: #{tpu_custom_call.1} parent=99 // pred_check
          %p971 = pneg %p386
        $region102: #{tpu_custom_call.1} parent=99 // pred_check_branch
          %973 = sbr.rel (%p971) target = $region104
        $region103: #{tpu_custom_call.1} parent=99 // pred_region
          %s974 = sand.u32 %s371, 1
          %s975 = scalar_lea.sflag [#allocation6], %s974
          %s976 = sand.u32 %s371, 1
          %s977 = smul.addr %s976, 8
          %s978 = scalar_lea.vmem [#allocation10], %s977
          %979 = dma.done %s975, 128
        $region104: #{tpu_custom_call.1} parent=99 // pred_fallthru
          _
      $region100: #{tpu_custom_call.1} parent=5 // pred_fallthru
        _
    $region6: #{tpu_custom_call.1} parent=1 // loop_footer
      %s36 = sadd.s32 1, %s32
    $region7: #{tpu_custom_call.1} parent=1 // loop_footer_branch
      %31 = sbr.rel target = $region3
    $region8: #{tpu_custom_call.1} parent=1 // loop_exit
      _
    %980 = vsyncpa [#allocation5], 1
    %s981 = scalar_lea.sflag [#allocation5], 1
    %982 = vsyncpa %s981, 1
    %983 = vsyncpa [#allocation8], 1
    %984 = vsyncpa [#allocation6], 1
    %s985 = scalar_lea.sflag [#allocation6], 1
    %986 = vsyncpa %s985, 1

</llo_original>
